<compile_context>
chip_gen: v6e
topology: v6e:2x2x1
jax: 0.10.0
libtpu: 0.0.40
codegen_flags: <defaults>
</compile_context>

<pallas_src>
import functools
import math

import numpy as np
import jax
import jax.numpy as jnp
from jax.experimental import pallas as pl
from jax.experimental.pallas import tpu as pltpu


def _gaussian_1d(kernel_size: int, sigma: float) -> np.ndarray:
    """Normalized 1-D Gaussian; the module's 2-D kernel is exactly its outer product."""
    i = np.arange(kernel_size, dtype=np.float64)
    mean = (kernel_size - 1) / 2.0
    g = np.exp(-(((i - mean) / float(sigma)) ** 2) / 2.0)
    return (g / g.sum()).astype(np.float32)


def _pick_vmem_limit_bytes() -> int:
    """Generation-aware scoped-VMEM target (96 MiB on v5e/v6e, 48 MiB on v7x)."""
    cap = 64 * 1024 * 1024  # conservative fallback = v7x per-TC VMEM
    try:
        info = pltpu.get_tpu_info()
        cap = int(getattr(info, "vmem_capacity_bytes", cap))
    except Exception:
        pass
    limit = min(cap * 3 // 4, cap - (16 << 20))
    return int(max(limit, min(cap, 32 << 20)))


def _smooth_kernel(x_ref, o_ref, hp_ref, *, w1d, pad, H, W):
    """One (Cb, H, W) channel block.

    hp_ref: (Cb, H, W + 2*pad) f32 scratch holding the vertically blurred block plus its
    horizontal reflect halo (the only full-size intermediate store in the kernel).
    """
    c = pad                                      # centre tap; w1d[c - d] == w1d[c + d]
    xf = x_ref[...].astype(jnp.float32)          # (Cb, H, W), widened in-kernel only

    # ---- vertical pass, interior rows: taps read x directly (no padded-input copy) ----
    n_mid = H - 2 * pad
    if n_mid > 0:
        mid = w1d[c] * xf[:, pad:pad + n_mid, :]
        for d in range(1, pad + 1):              # symmetry-paired taps: 1 mul per pair
            mid = mid + w1d[c - d] * (xf[:, pad - d:pad - d + n_mid, :]
                                      + xf[:, pad + d:pad + d + n_mid, :])
        hp_ref[:, pad:pad + n_mid, pad:pad + W] = mid

    # ---- vertical pass, the 2*pad boundary rows (reflect indices resolved at trace time) ----
    def _refl(i):
        return -i if i < 0 else (2 * (H - 1) - i if i > H - 1 else i)

    for h in [r for r in range(H) if r < pad or r >= H - pad]:
        row = w1d[c] * xf[:, h:h + 1, :]
        for d in range(1, pad + 1):
            lo, hi = _refl(h - d), _refl(h + d)
            row = row + w1d[c - d] * (xf[:, lo:lo + 1, :] + xf[:, hi:hi + 1, :])
        hp_ref[:, h:h + 1, pad:pad + W] = row

    # ---- horizontal reflect halo columns of the vertical result ----
    # TODO(synk): for large pad build each side with one lane-reversed 2*pad-wide store
    #             (pltpu.roll + select) instead of per-column copies.
    for j in range(pad):
        hp_ref[:, :, j:j + 1] = hp_ref[:, :, 2 * pad - j:2 * pad - j + 1]
        rc = pad + W + j
        hp_ref[:, :, rc:rc + 1] = hp_ref[:, :, pad + W - 2 - j:pad + W - 1 - j]

    # ---- horizontal pass (symmetry-paired taps) + single output store ----
    acc = w1d[c] * hp_ref[:, :, pad:pad + W]
    for d in range(1, pad + 1):
        acc = acc + w1d[c - d] * (hp_ref[:, :, pad - d:pad - d + W]
                                  + hp_ref[:, :, pad + d:pad + d + W])
    o_ref[...] = acc.astype(o_ref.dtype)


def gaussian_smoothing(x, channels: int, kernel_size: int, sigma: float):
    """Forward pass of GaussianSmoothing(channels, kernel_size, sigma, dim=2)."""
    N, C, H, W = x.shape
    assert C == channels
    K = int(kernel_size)
    assert K % 2 == 1, "only odd kernel_size keeps the 'same' output shape"
    pad = (K - 1) // 2
    assert pad < H and pad < W, "reflect padding requires pad < spatial size"

    # Weights are module-construction constants -> bake as trace-time scalars.
    g = _gaussian_1d(K, sigma)
    w1d = [float(v) for v in g]

    NC = N * C
    xr = x.reshape(NC, H, W)                       # free (leading-dim collapse)

    # ---- channel-block sizing from the real per-step VMEM working set ----
    vmem_limit = _pick_vmem_limit_bytes()
    in_isz = jnp.dtype(x.dtype).itemsize
    per_chan = (4 * H * W * in_isz                 # 2x input + 2x output double buffers
                + H * (W + 2 * pad) * 4            # f32 scratch (vertical result + halo)
                + 4 * H * W * 4)                   # headroom for f32 value temporaries
    cb_cap = max(1, int(0.75 * vmem_limit) // per_chan)
    min_steps = 2 if NC >= 2 else 1                # >=2 steps lets 2-TC parts shard "parallel"
    Cb = max(1, min(cb_cap, pl.cdiv(NC, min_steps)))
    grid = (pl.cdiv(NC, Cb),)                      # Cb need not divide NC: edge block masked

    kernel = functools.partial(_smooth_kernel, w1d=w1d, pad=pad, H=H, W=W)

    out = pl.pallas_call(
        kernel,
        out_shape=jax.ShapeDtypeStruct((NC, H, W), x.dtype),
        grid_spec=pltpu.PrefetchScalarGridSpec(
            num_scalar_prefetch=0,
            grid=grid,
            in_specs=[pl.BlockSpec((Cb, H, W), lambda i: (i, 0, 0))],
            out_specs=pl.BlockSpec((Cb, H, W), lambda i: (i, 0, 0)),
            scratch_shapes=[pltpu.VMEM((Cb, H, W + 2 * pad), jnp.float32)],
        ),
        compiler_params=pltpu.CompilerParams(
            dimension_semantics=("parallel",),
            vmem_limit_bytes=int(vmem_limit),
        ),
    )(xr)
    return out.reshape(N, C, H, W)


if __name__ == "__main__":
    N, C, H, W = 2, 4, 16, 16
    kernel_size, sigma = 3, 1.0

    key = jax.random.PRNGKey(0)
    x = jax.random.normal(key, (N, C, H, W), dtype=jnp.float32)

    out = gaussian_smoothing(x, channels=C, kernel_size=kernel_size, sigma=sigma)
    out = jax.block_until_ready(out)

    # Module-faithful reference: 2-D kernel built like GaussianSmoothing.__init__,
    # reflect pad, depthwise conv.
    K = kernel_size
    pad = (K - 1) // 2
    mg_i, mg_j = np.meshgrid(np.arange(K, dtype=np.float32),
                             np.arange(K, dtype=np.float32), indexing="ij")
    mean = (K - 1) / 2
    w2d = (1.0 / (sigma * math.sqrt(2 * math.pi)) * np.exp(-(((mg_i - mean) / sigma) ** 2) / 2)) \
        * (1.0 / (sigma * math.sqrt(2 * math.pi)) * np.exp(-(((mg_j - mean) / sigma) ** 2) / 2))
    w2d = (w2d / w2d.sum()).astype(np.float32)

    xp = jnp.pad(x, ((0, 0), (0, 0), (pad, pad), (pad, pad)), mode="reflect")
    w = jnp.broadcast_to(jnp.asarray(w2d)[None, None], (C, 1, K, K))
    ref = jax.lax.conv_general_dilated(
        xp, w, window_strides=(1, 1), padding="VALID",
        dimension_numbers=("NCHW", "OIHW", "NCHW"),
        feature_group_count=C,
    )

    assert out.shape == (N, C, H, W)
    np.testing.assert_allclose(np.asarray(out), np.asarray(ref), rtol=1e-5, atol=1e-5)

    print("KERNEL_OK")
</pallas_src>

<mosaic_0001>
module attributes {stable_mosaic.version = 11 : i64} {
  func.func @_smooth_kernel(%arg0: i32, %arg1: memref<4x16x16xf32, #tpu.memory_space<vmem>>, %arg2: memref<4x16x16xf32, #tpu.memory_space<vmem>>, %arg3: memref<4x16x18xf32, #tpu.memory_space<vmem>>) attributes {dimension_semantics = [#tpu.dimension_semantics<parallel>], iteration_bounds = array<i64: 2>, scalar_prefetch = 0 : i64, scratch_operands = 1 : i64, tpu.core_type = #tpu.core_type<tc>, window_params = [{transform_indices = @transform_0, window_bounds = array<i64: 4, 16, 16>}, {transform_indices = @transform_1, window_bounds = array<i64: 4, 16, 16>}]} {
    %c0 = arith.constant 0 : index
    %c0_0 = arith.constant 0 : index
    %c0_1 = arith.constant 0 : index
    %0 = vector.load %arg1[%c0, %c0_0, %c0_1] : memref<4x16x16xf32, #tpu.memory_space<vmem>>, vector<4x16x16xf32>
    %1 = vector.extract_strided_slice %0 {offsets = [0, 1, 0], sizes = [4, 14, 16], strides = [1, 1, 1]} : vector<4x16x16xf32> to vector<4x14x16xf32>
    %cst = arith.constant 0.451862752 : f32
    %2 = vector.broadcast %cst : f32 to vector<4x14x16xf32>
    %3 = arith.mulf %2, %1 : vector<4x14x16xf32>
    %4 = vector.extract_strided_slice %0 {offsets = [0, 0, 0], sizes = [4, 14, 16], strides = [1, 1, 1]} : vector<4x16x16xf32> to vector<4x14x16xf32>
    %5 = vector.extract_strided_slice %0 {offsets = [0, 2, 0], sizes = [4, 14, 16], strides = [1, 1, 1]} : vector<4x16x16xf32> to vector<4x14x16xf32>
    %6 = arith.addf %4, %5 : vector<4x14x16xf32>
    %cst_2 = arith.constant 0.274068624 : f32
    %7 = vector.broadcast %cst_2 : f32 to vector<4x14x16xf32>
    %8 = arith.mulf %7, %6 : vector<4x14x16xf32>
    %9 = arith.addf %3, %8 : vector<4x14x16xf32>
    %c0_3 = arith.constant 0 : index
    %c1 = arith.constant 1 : index
    %c1_4 = arith.constant 1 : index
    %10 = vector.load %arg3[%c0_3, %c1, %c1_4] : memref<4x16x18xf32, #tpu.memory_space<vmem>>, vector<4x14x16xf32>
    tpu.vector_store %arg3[%c0_3, %c1, %c1_4], %9 {strides = array<i32>} : memref<4x16x18xf32, #tpu.memory_space<vmem>>, vector<4x14x16xf32>,
    %11 = vector.extract_strided_slice %0 {offsets = [0, 0, 0], sizes = [4, 1, 16], strides = [1, 1, 1]} : vector<4x16x16xf32> to vector<4x1x16xf32>
    %cst_5 = arith.constant 0.451862752 : f32
    %12 = vector.broadcast %cst_5 : f32 to vector<4x1x16xf32>
    %13 = arith.mulf %12, %11 : vector<4x1x16xf32>
    %14 = vector.extract_strided_slice %0 {offsets = [0, 1, 0], sizes = [4, 1, 16], strides = [1, 1, 1]} : vector<4x16x16xf32> to vector<4x1x16xf32>
    %15 = vector.extract_strided_slice %0 {offsets = [0, 1, 0], sizes = [4, 1, 16], strides = [1, 1, 1]} : vector<4x16x16xf32> to vector<4x1x16xf32>
    %16 = arith.addf %14, %15 : vector<4x1x16xf32>
    %cst_6 = arith.constant 0.274068624 : f32
    %17 = vector.broadcast %cst_6 : f32 to vector<4x1x16xf32>
    %18 = arith.mulf %17, %16 : vector<4x1x16xf32>
    %19 = arith.addf %13, %18 : vector<4x1x16xf32>
    %c0_7 = arith.constant 0 : index
    %c0_8 = arith.constant 0 : index
    %c1_9 = arith.constant 1 : index
    %20 = vector.load %arg3[%c0_7, %c0_8, %c1_9] : memref<4x16x18xf32, #tpu.memory_space<vmem>>, vector<4x1x16xf32>
    tpu.vector_store %arg3[%c0_7, %c0_8, %c1_9], %19 {strides = array<i32>} : memref<4x16x18xf32, #tpu.memory_space<vmem>>, vector<4x1x16xf32>,
    %21 = vector.extract_strided_slice %0 {offsets = [0, 15, 0], sizes = [4, 1, 16], strides = [1, 1, 1]} : vector<4x16x16xf32> to vector<4x1x16xf32>
    %cst_10 = arith.constant 0.451862752 : f32
    %22 = vector.broadcast %cst_10 : f32 to vector<4x1x16xf32>
    %23 = arith.mulf %22, %21 : vector<4x1x16xf32>
    %24 = vector.extract_strided_slice %0 {offsets = [0, 14, 0], sizes = [4, 1, 16], strides = [1, 1, 1]} : vector<4x16x16xf32> to vector<4x1x16xf32>
    %25 = vector.extract_strided_slice %0 {offsets = [0, 14, 0], sizes = [4, 1, 16], strides = [1, 1, 1]} : vector<4x16x16xf32> to vector<4x1x16xf32>
    %26 = arith.addf %24, %25 : vector<4x1x16xf32>
    %cst_11 = arith.constant 0.274068624 : f32
    %27 = vector.broadcast %cst_11 : f32 to vector<4x1x16xf32>
    %28 = arith.mulf %27, %26 : vector<4x1x16xf32>
    %29 = arith.addf %23, %28 : vector<4x1x16xf32>
    %c0_12 = arith.constant 0 : index
    %c15 = arith.constant 15 : index
    %c1_13 = arith.constant 1 : index
    %30 = vector.load %arg3[%c0_12, %c15, %c1_13] : memref<4x16x18xf32, #tpu.memory_space<vmem>>, vector<4x1x16xf32>
    tpu.vector_store %arg3[%c0_12, %c15, %c1_13], %29 {strides = array<i32>} : memref<4x16x18xf32, #tpu.memory_space<vmem>>, vector<4x1x16xf32>,
    %c0_14 = arith.constant 0 : index
    %c0_15 = arith.constant 0 : index
    %c2 = arith.constant 2 : index
    %31 = vector.load %arg3[%c0_14, %c0_15, %c2] : memref<4x16x18xf32, #tpu.memory_space<vmem>>, vector<4x16x1xf32>
    %c0_16 = arith.constant 0 : index
    %c0_17 = arith.constant 0 : index
    %c0_18 = arith.constant 0 : index
    %32 = vector.load %arg3[%c0_16, %c0_17, %c0_18] : memref<4x16x18xf32, #tpu.memory_space<vmem>>, vector<4x16x1xf32>
    tpu.vector_store %arg3[%c0_16, %c0_17, %c0_18], %31 {strides = array<i32>} : memref<4x16x18xf32, #tpu.memory_space<vmem>>, vector<4x16x1xf32>,
    %c0_19 = arith.constant 0 : index
    %c0_20 = arith.constant 0 : index
    %c15_21 = arith.constant 15 : index
    %33 = vector.load %arg3[%c0_19, %c0_20, %c15_21] : memref<4x16x18xf32, #tpu.memory_space<vmem>>, vector<4x16x1xf32>
    %c0_22 = arith.constant 0 : index
    %c0_23 = arith.constant 0 : index
    %c17 = arith.constant 17 : index
    %34 = vector.load %arg3[%c0_22, %c0_23, %c17] : memref<4x16x18xf32, #tpu.memory_space<vmem>>, vector<4x16x1xf32>
    tpu.vector_store %arg3[%c0_22, %c0_23, %c17], %33 {strides = array<i32>} : memref<4x16x18xf32, #tpu.memory_space<vmem>>, vector<4x16x1xf32>,
    %c0_24 = arith.constant 0 : index
    %c0_25 = arith.constant 0 : index
    %c1_26 = arith.constant 1 : index
    %35 = vector.load %arg3[%c0_24, %c0_25, %c1_26] : memref<4x16x18xf32, #tpu.memory_space<vmem>>, vector<4x16x16xf32>
    %cst_27 = arith.constant 0.451862752 : f32
    %36 = vector.broadcast %cst_27 : f32 to vector<4x16x16xf32>
    %37 = arith.mulf %36, %35 : vector<4x16x16xf32>
    %c0_28 = arith.constant 0 : index
    %c0_29 = arith.constant 0 : index
    %c0_30 = arith.constant 0 : index
    %38 = vector.load %arg3[%c0_28, %c0_29, %c0_30] : memref<4x16x18xf32, #tpu.memory_space<vmem>>, vector<4x16x16xf32>
    %c0_31 = arith.constant 0 : index
    %c0_32 = arith.constant 0 : index
    %c2_33 = arith.constant 2 : index
    %39 = vector.load %arg3[%c0_31, %c0_32, %c2_33] : memref<4x16x18xf32, #tpu.memory_space<vmem>>, vector<4x16x16xf32>
    %40 = arith.addf %38, %39 : vector<4x16x16xf32>
    %cst_34 = arith.constant 0.274068624 : f32
    %41 = vector.broadcast %cst_34 : f32 to vector<4x16x16xf32>
    %42 = arith.mulf %41, %40 : vector<4x16x16xf32>
    %43 = arith.addf %37, %42 : vector<4x16x16xf32>
    %c0_35 = arith.constant 0 : index
    %c0_36 = arith.constant 0 : index
    %c0_37 = arith.constant 0 : index
    %44 = vector.load %arg2[%c0_35, %c0_36, %c0_37] : memref<4x16x16xf32, #tpu.memory_space<vmem>>, vector<4x16x16xf32>
    tpu.vector_store %arg2[%c0_35, %c0_36, %c0_37], %43 {strides = array<i32>} : memref<4x16x16xf32, #tpu.memory_space<vmem>>, vector<4x16x16xf32>,
    return
  }
  func.func @transform_0(%arg0: i32) -> (i32, i32, i32) {
    %c0_i32 = arith.constant 0 : i32
    %c0_i32_0 = arith.constant 0 : i32
    %c0_i32_1 = arith.constant 0 : i32
    return %arg0, %c0_i32, %c0_i32_0 : i32, i32, i32
  }
  func.func @transform_1(%arg0: i32) -> (i32, i32, i32) {
    %c0_i32 = arith.constant 0 : i32
    %c0_i32_0 = arith.constant 0 : i32
    %c0_i32_1 = arith.constant 0 : i32
    return %arg0, %c0_i32, %c0_i32_0 : i32, i32, i32
  }
}

</mosaic_0001>

<llo_original>
// kernel: tpu_custom_call.1
$region0: #{tpu_custom_call.1}
  #allocation0 [shape = 'u32[]', space=smem, size = 0x4, offset = 0x4, fixed_abs, tag = 'smem constant byte address 0x4 - core index']
  #allocation1 [shape = 'u32[144,128]{1,0:T(1,128)}', space=vmem, size = 0x12000, scoped, tag = 'internal scratch']
  #allocation2 [shape = 'f32[4,16,18]{2,1,0:T(8,128)}', space=vmem, size = 0x8000, scoped, tag = 'scratch operand']
  %s0 = inlined_call_operand.hbm [shape: f32[8,16,16], index: 0, kind: input, shape index: {}]
  %s1 = inlined_call_operand.hbm [shape: f32[8,16,16], index: 1, kind: output, shape index: {}]
  %s2 = sld [smem:[#allocation0]]
  $region41: #{tpu_custom_call.1} parent=0
    _
  %s4 = ssub.s32 1, %s2
  %s5 = scalar_select 0, %s4, %s2
  $region1: #{tpu_custom_call.1} parent=0
    #allocation3 [shape = 'u8[65536]{0}', space=vmem, size = 0x10000, scoped, tag = 'input window, operand 0']
    #allocation4 [shape = 's32[2]{0}', space=sflag, size = 0x8, scoped, tag = 'scoped memory for tpu_custom_call.1']
    #allocation5 [shape = 's32[2]{0}', space=sflag, size = 0x8, scoped, tag = 'scoped memory for tpu_custom_call.1']
    #allocation6 [shape = 'u8[65536]{0}', space=vmem, size = 0x10000, scoped, tag = 'output window, operand 0']
    %6 = vsyncpa [#allocation4], 0
    %s7 = scalar_lea.sflag [#allocation4], 1
    %8 = vsyncpa %s7, 0
    %9 = vsyncpa [#allocation5], 0
    %s10 = scalar_lea.sflag [#allocation5], 1
    %11 = vsyncpa %s10, 0
    loop: start=0, step=1, limit=4
    $region2: #{tpu_custom_call.1} parent=1 // loop_pre_header
      _
    $region3: #{tpu_custom_call.1} parent=1 // loop_header
      %s13 = sphi 0, %s17
      %p14 = scmp.ge.s32.totalorder %s13, 4
      %s23 = sphi 0, %s25
      %s26 = sphi 0, %s23
      %s27 = sphi 0, %s26
      %s43 = sphi 0, %s27
      %s49 = sphi 0, %s51
      %s52 = sphi 0, %s49
      %s53 = sphi 0, %s52
      %s69 = sphi 0, %s53
    $region4: #{tpu_custom_call.1} parent=1 // loop_header_branch
      %16 = sbr.rel (%p14) target = $region8
    $region5: #{tpu_custom_call.1} parent=1 // loop_body
      %s18 = ssub.s32 %s13, 1
      %s19 = ssub.s32 %s13, 2
      %s20 = sadd.s32 %s13, 1
      %s21 = ssub.s32 %s13, %s20
      %p22 = scmp.eq.s32.totalorder %s21, 0
      %s24 = sadd.s32 %s23, 1
      %s25 = scalar_select %p22, %s23, %s24
      %p28 = pneg %p22
      %p29 = scmp.eq.s32.totalorder %s13, 1
      %p30 = por %p28, %p29
      %p31 = scmp.ne.s32.totalorder %s23, %s26
      %p32 = scmp.eq.s32.totalorder %s13, 0
      %p33 = por %p31, %p32
      %p34 = scmp.ne.s32.totalorder %s23, %s26
      %p35 = scmp.eq.s32.totalorder %s18, 1
      %p36 = por %p34, %p35
      %p37 = scmp.ne.s32.totalorder %s26, %s27
      %p38 = scmp.eq.s32.totalorder %s18, 0
      %p39 = por %p37, %p38
      %p40 = scmp.ne.s32.totalorder %s26, %s27
      %p41 = scmp.eq.s32.totalorder %s19, 1
      %p42 = por %p40, %p41
      %p44 = scmp.ne.s32.totalorder %s27, %s43
      %p45 = scmp.eq.s32.totalorder %s19, 0
      %p46 = por %p44, %p45
      %s47 = ssub.s32 %s13, %s20
      %p48 = scmp.eq.s32.totalorder %s47, 0
      %s50 = sadd.s32 %s49, 1
      %s51 = scalar_select %p48, %s49, %s50
      %p54 = pneg %p48
      %p55 = scmp.eq.s32.totalorder %s13, 1
      %p56 = por %p54, %p55
      %p57 = scmp.ne.s32.totalorder %s49, %s52
      %p58 = scmp.eq.s32.totalorder %s13, 0
      %p59 = por %p57, %p58
      %p60 = scmp.ne.s32.totalorder %s49, %s52
      %p61 = scmp.eq.s32.totalorder %s18, 1
      %p62 = por %p60, %p61
      %p63 = scmp.ne.s32.totalorder %s52, %s53
      %p64 = scmp.eq.s32.totalorder %s18, 0
      %p65 = por %p63, %p64
      %p66 = scmp.ne.s32.totalorder %s52, %s53
      %p67 = scmp.eq.s32.totalorder %s19, 1
      %p68 = por %p66, %p67
      %p70 = scmp.ne.s32.totalorder %s53, %s69
      %p71 = scmp.eq.s32.totalorder %s19, 0
      %p72 = por %p70, %p71
      %p73 = scmp.le.s32.totalorder 1, %s13
      %p74 = scmp.lt.s32.totalorder %s13, 3
      %p75 = pnand %p73, %p74
      %p76 = pneg %p75
      // Predicated region
      $region9: #{tpu_custom_call.1} parent=5 // pred_check
        _
      $region10: #{tpu_custom_call.1} parent=5 // pred_check_branch
        %78 = sbr.rel (%p75) target = $region12
      $region11: #{tpu_custom_call.1} parent=5 // pred_region
        %s79 = ssub.s32 %s13, 1
      $region12: #{tpu_custom_call.1} parent=5 // pred_fallthru
        _
      %p80 = scmp.lt.s32.totalorder %s13, 2
      // Predicated region
      $region13: #{tpu_custom_call.1} parent=5 // pred_check
        %p81 = pneg %p80
      $region14: #{tpu_custom_call.1} parent=5 // pred_check_branch
        %83 = sbr.rel (%p81) target = $region16
      $region15: #{tpu_custom_call.1} parent=5 // pred_region
        // Predicated region
        $region17: #{tpu_custom_call.1} parent=15 // pred_check
          %p84 = pneg %p33
        $region18: #{tpu_custom_call.1} parent=15 // pred_check_branch
          %86 = sbr.rel (%p84) target = $region20
        $region19: #{tpu_custom_call.1} parent=15 // pred_region
          %s87 = sand.u32 %s23, 1
          %s88 = scalar_lea.sflag [#allocation4], %s87
          %s89 = sand.u32 %s23, 1
          %s90 = smul.addr %s89, 64
          %s91 = scalar_lea.vmem [#allocation3], %s90
          %s92 = smul.u32 4, %s13
          %s94 = ssub.s32 1024, 1024
          %95 = vsyncadd %s88, %s94
          %s96 = smul.addr %s92, 2
          %s97 = smul.addr %s96, 128
          %s98 = scalar_lea.hbm %s0, %s97
          %s99 = sshll.u32 %s91, 4
          %s100 = int_to_ptr.vmem [resolvable:$true] %s99
          %105 = dma.hbm_to_vmem [thread:$0]  %s98, 1024, %s100, %s88, 128, 128, 8
        $region20: #{tpu_custom_call.1} parent=15 // pred_fallthru
          _
      $region16: #{tpu_custom_call.1} parent=5 // pred_fallthru
        _
      %p106 = scmp.le.s32.totalorder 1, %s13
      %p107 = scmp.lt.s32.totalorder %s13, 3
      %p108 = pnand %p106, %p107
      %p109 = pneg %p108
      // Predicated region
      $region21: #{tpu_custom_call.1} parent=5 // pred_check
        _
      $region22: #{tpu_custom_call.1} parent=5 // pred_check_branch
        %111 = sbr.rel (%p108) target = $region24
      $region23: #{tpu_custom_call.1} parent=5 // pred_region
        %s112 = ssub.s32 %s13, 1
        %s113 = sand.u32 %s26, 1
        %s114 = scalar_lea.sflag [#allocation4], %s113
        %s115 = sand.u32 %s26, 1
        %s116 = smul.addr %s115, 64
        %s117 = scalar_lea.vmem [#allocation3], %s116
        // Predicated region
        $region25: #{tpu_custom_call.1} parent=23 // pred_check
          %p118 = pneg %p39
        $region26: #{tpu_custom_call.1} parent=23 // pred_check_branch
          %120 = sbr.rel (%p118) target = $region28
        $region27: #{tpu_custom_call.1} parent=23 // pred_region
          %121 = dma.done %s114, 1024
        $region28: #{tpu_custom_call.1} parent=23 // pred_fallthru
          _
        %s122 = sand.u32 %s26, 1
        %s123 = scalar_lea.sflag [#allocation4], %s122
        %s124 = sand.u32 %s26, 1
        %s125 = smul.addr %s124, 64
        %s126 = scalar_lea.vmem [#allocation3], %s125
        %p127 = pneg %p39
        %p128 = pneg %p36
        %p129 = pneg %p65
        %p130 = pneg %p62
        %s131 = sand.u32 %s52, 1
        %s132 = scalar_lea.sflag [#allocation5], %s131
        %s133 = sand.u32 %s52, 1
        %s134 = smul.addr %s133, 64
        %s135 = scalar_lea.vmem [#allocation6], %s134
        %s136 = smul.u32 4, %s18
        %s137 = smul.u32 4, %s18
        %v138 = vld [vmem:[%s117] sm:$0xff]
        %v139 = vld [vmem:[%s117 + $0x8] sm:$0xff]
        %v140 = vld [vmem:[%s117 + $0x10] sm:$0xff]
        %v141 = vld [vmem:[%s117 + $0x18] sm:$0xff]
        %v142 = vld [vmem:[%s117 + $0x20] sm:$0xff]
        %v143 = vld [vmem:[%s117 + $0x28] sm:$0xff]
        %v144 = vld [vmem:[%s117 + $0x30] sm:$0xff]
        %v145 = vld [vmem:[%s117 + $0x38] sm:$0xff]
        %v146 = vmul.f32 %v138, 0.45186275
        %v147 = vmul.f32 %v139, 0.45186275
        %v148 = vmul.f32 %v140, 0.45186275
        %v149 = vmul.f32 %v141, 0.45186275
        %v150 = vmul.f32 %v142, 0.45186275
        %v151 = vmul.f32 %v143, 0.45186275
        %v152 = vmul.f32 %v144, 0.45186275
        %v153 = vmul.f32 %v145, 0.45186275
        %vm162 = vcmask 1045504
        %v163 = vrot.slane %v138, 2
        %v164 = vrot.slane %v139, 2
        %v165 = vsel %vm162, %v163, %v164
        %v166 = vrot.slane %v140, 2
        %v167 = vrot.slane %v141, 2
        %v168 = vsel %vm162, %v166, %v167
        %v169 = vrot.slane %v142, 2
        %v170 = vrot.slane %v143, 2
        %v171 = vsel %vm162, %v169, %v170
        %v172 = vrot.slane %v144, 2
        %v173 = vrot.slane %v145, 2
        %v174 = vsel %vm162, %v172, %v173
        %v183 = vadd.f32 %v138, %v165
        %v184 = vadd.f32 %v139, %v164
        %v185 = vadd.f32 %v140, %v168
        %v186 = vadd.f32 %v141, %v167
        %v187 = vadd.f32 %v142, %v171
        %v188 = vadd.f32 %v143, %v170
        %v189 = vadd.f32 %v144, %v174
        %v190 = vadd.f32 %v145, %v173
        %v191 = vmul.f32 %v183, 0.27406862
        %v192 = vmul.f32 %v184, 0.27406862
        %v193 = vmul.f32 %v185, 0.27406862
        %v194 = vmul.f32 %v186, 0.27406862
        %v195 = vmul.f32 %v187, 0.27406862
        %v196 = vmul.f32 %v188, 0.27406862
        %v197 = vmul.f32 %v189, 0.27406862
        %v198 = vmul.f32 %v190, 0.27406862
        %vm207 = vcmask 1040384
        %v208 = vrot.slane %v191, 7
        %v209 = vrot.slane %v192, 7
        %v210 = vsel %vm207, %v208, %v209
        %v211 = vrot.slane %v193, 7
        %v212 = vrot.slane %v194, 7
        %v213 = vsel %vm207, %v211, %v212
        %v214 = vrot.slane %v195, 7
        %v215 = vrot.slane %v196, 7
        %v216 = vsel %vm207, %v214, %v215
        %v217 = vrot.slane %v197, 7
        %v218 = vrot.slane %v198, 7
        %v219 = vsel %vm207, %v217, %v218
        %v228 = vadd.f32 %v146, %v208
        %v229 = vadd.f32 %v147, %v210
        %v230 = vadd.f32 %v148, %v211
        %v231 = vadd.f32 %v149, %v213
        %v232 = vadd.f32 %v150, %v214
        %v233 = vadd.f32 %v151, %v216
        %v234 = vadd.f32 %v152, %v217
        %v235 = vadd.f32 %v153, %v219
        %244 = vrot.lane.b32.xlu0 %v228, 1
        %v245 = vpop.permute.xlu0 %244
        %246 = vrot.lane.b32.xlu0 %v229, 1
        %v247 = vpop.permute.xlu0 %246
        %248 = vrot.lane.b32.xlu0 %v230, 1
        %v249 = vpop.permute.xlu0 %248
        %250 = vrot.lane.b32.xlu0 %v231, 1
        %v251 = vpop.permute.xlu0 %250
        %252 = vrot.lane.b32.xlu0 %v232, 1
        %v253 = vpop.permute.xlu0 %252
        %254 = vrot.lane.b32.xlu0 %v233, 1
        %v255 = vpop.permute.xlu0 %254
        %256 = vrot.lane.b32.xlu0 %v234, 1
        %v257 = vpop.permute.xlu0 %256
        %258 = vrot.lane.b32.xlu0 %v235, 1
        %v259 = vpop.permute.xlu0 %258
        %vm268 = vcmask 138249
        %269 = vst.msk [vmem:[#allocation2] sm:$0xfe] %vm268, %v245
        %vm270 = vcmask 137224
        %271 = vst.msk [vmem:[#allocation2 + $0x8] sm:$0x7f] %vm270, %v247
        %272 = vst.msk [vmem:[#allocation2 + $0x10] sm:$0xfe] %vm268, %v249
        %273 = vst.msk [vmem:[#allocation2 + $0x18] sm:$0x7f] %vm270, %v251
        %274 = vst.msk [vmem:[#allocation2 + $0x20] sm:$0xfe] %vm268, %v253
        %275 = vst.msk [vmem:[#allocation2 + $0x28] sm:$0x7f] %vm270, %v255
        %276 = vst.msk [vmem:[#allocation2 + $0x30] sm:$0xfe] %vm268, %v257
        %277 = vst.msk [vmem:[#allocation2 + $0x38] sm:$0x7f] %vm270, %v259
        %v278 = vadd.f32 %v138, %v138
        %v279 = vadd.f32 %v140, %v140
        %v280 = vadd.f32 %v142, %v142
        %v281 = vadd.f32 %v144, %v144
        %v282 = vmul.f32 %v278, 0.27406862
        %v283 = vmul.f32 %v279, 0.27406862
        %v284 = vmul.f32 %v280, 0.27406862
        %v285 = vmul.f32 %v281, 0.27406862
        %v290 = vrot.slane %v282, 1
        %v291 = vrot.slane %v283, 1
        %v292 = vrot.slane %v284, 1
        %v293 = vrot.slane %v285, 1
        %v298 = vadd.f32 %v146, %v290
        %v299 = vadd.f32 %v148, %v291
        %v300 = vadd.f32 %v150, %v292
        %v301 = vadd.f32 %v152, %v293
        %306 = vrot.lane.b32.xlu0 %v298, 1
        %v307 = vpop.permute.xlu0 %306
        %308 = vrot.lane.b32.xlu0 %v299, 1
        %v309 = vpop.permute.xlu0 %308
        %310 = vrot.lane.b32.xlu0 %v300, 1
        %v311 = vpop.permute.xlu0 %310
        %312 = vrot.lane.b32.xlu0 %v301, 1
        %v313 = vpop.permute.xlu0 %312
        %vm318 = vcmask 131080
        %319 = vst.msk [vmem:[#allocation2] sm:$0x1] %vm318, %v307
        %320 = vst.msk [vmem:[#allocation2 + $0x10] sm:$0x1] %vm318, %v309
        %321 = vst.msk [vmem:[#allocation2 + $0x20] sm:$0x1] %vm318, %v311
        %322 = vst.msk [vmem:[#allocation2 + $0x30] sm:$0x1] %vm318, %v313
        %v323 = vadd.f32 %v139, %v139
        %v324 = vadd.f32 %v141, %v141
        %v325 = vadd.f32 %v143, %v143
        %v326 = vadd.f32 %v145, %v145
        %v327 = vmul.f32 %v323, 0.27406862
        %v328 = vmul.f32 %v324, 0.27406862
        %v329 = vmul.f32 %v325, 0.27406862
        %v330 = vmul.f32 %v326, 0.27406862
        %v335 = vrot.slane %v327, 7
        %v336 = vrot.slane %v328, 7
        %v337 = vrot.slane %v329, 7
        %v338 = vrot.slane %v330, 7
        %v343 = vadd.f32 %v147, %v335
        %v344 = vadd.f32 %v149, %v336
        %v345 = vadd.f32 %v151, %v337
        %v346 = vadd.f32 %v153, %v338
        %351 = vrot.lane.b32.xlu0 %v343, 1
        %v352 = vpop.permute.xlu0 %351
        %353 = vrot.lane.b32.xlu0 %v344, 1
        %v354 = vpop.permute.xlu0 %353
        %355 = vrot.lane.b32.xlu0 %v345, 1
        %v356 = vpop.permute.xlu0 %355
        %357 = vrot.lane.b32.xlu0 %v346, 1
        %v358 = vpop.permute.xlu0 %357
        %vm363 = vcmask 138255
        %364 = vst.msk [vmem:[#allocation2 + $0x8] sm:$0x80] %vm363, %v352
        %365 = vst.msk [vmem:[#allocation2 + $0x18] sm:$0x80] %vm363, %v354
        %366 = vst.msk [vmem:[#allocation2 + $0x28] sm:$0x80] %vm363, %v356
        %367 = vst.msk [vmem:[#allocation2 + $0x38] sm:$0x80] %vm363, %v358
        %v368 = vld [vmem:[#allocation2] sm:$0xff]
        %v369 = vld [vmem:[#allocation2 + $0x8] sm:$0xff]
        %v370 = vld [vmem:[#allocation2 + $0x10] sm:$0xff]
        %v371 = vld [vmem:[#allocation2 + $0x18] sm:$0xff]
        %v372 = vld [vmem:[#allocation2 + $0x20] sm:$0xff]
        %v373 = vld [vmem:[#allocation2 + $0x28] sm:$0xff]
        %v374 = vld [vmem:[#allocation2 + $0x30] sm:$0xff]
        %v375 = vld [vmem:[#allocation2 + $0x38] sm:$0xff]
        %384 = vrot.lane.b32.xlu0 %v368, 126
        %v385 = vpop.permute.xlu0 %384
        %386 = vrot.lane.b32.xlu0 %v369, 126
        %v387 = vpop.permute.xlu0 %386
        %388 = vrot.lane.b32.xlu0 %v370, 126
        %v389 = vpop.permute.xlu0 %388
        %390 = vrot.lane.b32.xlu0 %v371, 126
        %v391 = vpop.permute.xlu0 %390
        %392 = vrot.lane.b32.xlu0 %v372, 126
        %v393 = vpop.permute.xlu0 %392
        %394 = vrot.lane.b32.xlu0 %v373, 126
        %v395 = vpop.permute.xlu0 %394
        %396 = vrot.lane.b32.xlu0 %v374, 126
        %v397 = vpop.permute.xlu0 %396
        %398 = vrot.lane.b32.xlu0 %v375, 126
        %v399 = vpop.permute.xlu0 %398
        %vm408 = vcmask 7168
        %409 = vst.msk [vmem:[#allocation2] sm:$0xff] %vm408, %v385
        %410 = vst.msk [vmem:[#allocation2 + $0x8] sm:$0xff] %vm408, %v387
        %411 = vst.msk [vmem:[#allocation2 + $0x10] sm:$0xff] %vm408, %v389
        %412 = vst.msk [vmem:[#allocation2 + $0x18] sm:$0xff] %vm408, %v391
        %413 = vst.msk [vmem:[#allocation2 + $0x20] sm:$0xff] %vm408, %v393
        %414 = vst.msk [vmem:[#allocation2 + $0x28] sm:$0xff] %vm408, %v395
        %415 = vst.msk [vmem:[#allocation2 + $0x30] sm:$0xff] %vm408, %v397
        %416 = vst.msk [vmem:[#allocation2 + $0x38] sm:$0xff] %vm408, %v399
        %v417 = vld [vmem:[#allocation2] sm:$0xff]
        %v418 = vld [vmem:[#allocation2 + $0x8] sm:$0xff]
        %v419 = vld [vmem:[#allocation2 + $0x10] sm:$0xff]
        %v420 = vld [vmem:[#allocation2 + $0x18] sm:$0xff]
        %v421 = vld [vmem:[#allocation2 + $0x20] sm:$0xff]
        %v422 = vld [vmem:[#allocation2 + $0x28] sm:$0xff]
        %v423 = vld [vmem:[#allocation2 + $0x30] sm:$0xff]
        %v424 = vld [vmem:[#allocation2 + $0x38] sm:$0xff]
        %433 = vrot.lane.b32.xlu0 %v417, 2
        %v434 = vpop.permute.xlu0 %433
        %435 = vrot.lane.b32.xlu0 %v418, 2
        %v436 = vpop.permute.xlu0 %435
        %437 = vrot.lane.b32.xlu0 %v419, 2
        %v438 = vpop.permute.xlu0 %437
        %439 = vrot.lane.b32.xlu0 %v420, 2
        %v440 = vpop.permute.xlu0 %439
        %441 = vrot.lane.b32.xlu0 %v421, 2
        %v442 = vpop.permute.xlu0 %441
        %443 = vrot.lane.b32.xlu0 %v422, 2
        %v444 = vpop.permute.xlu0 %443
        %445 = vrot.lane.b32.xlu0 %v423, 2
        %v446 = vpop.permute.xlu0 %445
        %447 = vrot.lane.b32.xlu0 %v424, 2
        %v448 = vpop.permute.xlu0 %447
        %vm457 = vcmask 146568
        %458 = vst.msk [vmem:[#allocation2] sm:$0xff] %vm457, %v434
        %459 = vst.msk [vmem:[#allocation2 + $0x8] sm:$0xff] %vm457, %v436
        %460 = vst.msk [vmem:[#allocation2 + $0x10] sm:$0xff] %vm457, %v438
        %461 = vst.msk [vmem:[#allocation2 + $0x18] sm:$0xff] %vm457, %v440
        %462 = vst.msk [vmem:[#allocation2 + $0x20] sm:$0xff] %vm457, %v442
        %463 = vst.msk [vmem:[#allocation2 + $0x28] sm:$0xff] %vm457, %v444
        %464 = vst.msk [vmem:[#allocation2 + $0x30] sm:$0xff] %vm457, %v446
        %465 = vst.msk [vmem:[#allocation2 + $0x38] sm:$0xff] %vm457, %v448
        %v466 = vld [vmem:[#allocation2] sm:$0xff]
        %v467 = vld [vmem:[#allocation2 + $0x8] sm:$0xff]
        %v468 = vld [vmem:[#allocation2 + $0x10] sm:$0xff]
        %v469 = vld [vmem:[#allocation2 + $0x18] sm:$0xff]
        %v470 = vld [vmem:[#allocation2 + $0x20] sm:$0xff]
        %v471 = vld [vmem:[#allocation2 + $0x28] sm:$0xff]
        %v472 = vld [vmem:[#allocation2 + $0x30] sm:$0xff]
        %v473 = vld [vmem:[#allocation2 + $0x38] sm:$0xff]
        %v474 = vmul.f32 %v466, 0.45186275
        %v475 = vmul.f32 %v467, 0.45186275
        %v476 = vmul.f32 %v468, 0.45186275
        %v477 = vmul.f32 %v469, 0.45186275
        %v478 = vmul.f32 %v470, 0.45186275
        %v479 = vmul.f32 %v471, 0.45186275
        %v480 = vmul.f32 %v472, 0.45186275
        %v481 = vmul.f32 %v473, 0.45186275
        %490 = vrot.lane.b32.xlu0 %v466, 126
        %v491 = vpop.permute.xlu0 %490
        %492 = vrot.lane.b32.xlu0 %v467, 126
        %v493 = vpop.permute.xlu0 %492
        %494 = vrot.lane.b32.xlu0 %v468, 126
        %v495 = vpop.permute.xlu0 %494
        %496 = vrot.lane.b32.xlu0 %v469, 126
        %v497 = vpop.permute.xlu0 %496
        %498 = vrot.lane.b32.xlu0 %v470, 126
        %v499 = vpop.permute.xlu0 %498
        %500 = vrot.lane.b32.xlu0 %v471, 126
        %v501 = vpop.permute.xlu0 %500
        %502 = vrot.lane.b32.xlu0 %v472, 126
        %v503 = vpop.permute.xlu0 %502
        %504 = vrot.lane.b32.xlu0 %v473, 126
        %v505 = vpop.permute.xlu0 %504
        %v514 = vadd.f32 %v466, %v491
        %v515 = vadd.f32 %v467, %v493
        %v516 = vadd.f32 %v468, %v495
        %v517 = vadd.f32 %v469, %v497
        %v518 = vadd.f32 %v470, %v499
        %v519 = vadd.f32 %v471, %v501
        %v520 = vadd.f32 %v472, %v503
        %v521 = vadd.f32 %v473, %v505
        %v522 = vmul.f32 %v514, 0.27406862
        %v523 = vmul.f32 %v515, 0.27406862
        %v524 = vmul.f32 %v516, 0.27406862
        %v525 = vmul.f32 %v517, 0.27406862
        %v526 = vmul.f32 %v518, 0.27406862
        %v527 = vmul.f32 %v519, 0.27406862
        %v528 = vmul.f32 %v520, 0.27406862
        %v529 = vmul.f32 %v521, 0.27406862
        %538 = vrot.lane.b32.xlu0 %v522, 1
        %v539 = vpop.permute.xlu0 %538
        %540 = vrot.lane.b32.xlu0 %v523, 1
        %v541 = vpop.permute.xlu0 %540
        %542 = vrot.lane.b32.xlu0 %v524, 1
        %v543 = vpop.permute.xlu0 %542
        %544 = vrot.lane.b32.xlu0 %v525, 1
        %v545 = vpop.permute.xlu0 %544
        %546 = vrot.lane.b32.xlu0 %v526, 1
        %v547 = vpop.permute.xlu0 %546
        %548 = vrot.lane.b32.xlu0 %v527, 1
        %v549 = vpop.permute.xlu0 %548
        %550 = vrot.lane.b32.xlu0 %v528, 1
        %v551 = vpop.permute.xlu0 %550
        %552 = vrot.lane.b32.xlu0 %v529, 1
        %v553 = vpop.permute.xlu0 %552
        %v562 = vadd.f32 %v474, %v539
        %v563 = vadd.f32 %v475, %v541
        %v564 = vadd.f32 %v476, %v543
        %v565 = vadd.f32 %v477, %v545
        %v566 = vadd.f32 %v478, %v547
        %v567 = vadd.f32 %v479, %v549
        %v568 = vadd.f32 %v480, %v551
        %v569 = vadd.f32 %v481, %v553
        %578 = vrot.lane.b32.xlu0 %v562, 127
        %v579 = vpop.permute.xlu0 %578
        %580 = vrot.lane.b32.xlu0 %v563, 127
        %v581 = vpop.permute.xlu0 %580
        %582 = vrot.lane.b32.xlu0 %v564, 127
        %v583 = vpop.permute.xlu0 %582
        %584 = vrot.lane.b32.xlu0 %v565, 127
        %v585 = vpop.permute.xlu0 %584
        %586 = vrot.lane.b32.xlu0 %v566, 127
        %v587 = vpop.permute.xlu0 %586
        %588 = vrot.lane.b32.xlu0 %v567, 127
        %v589 = vpop.permute.xlu0 %588
        %590 = vrot.lane.b32.xlu0 %v568, 127
        %v591 = vpop.permute.xlu0 %590
        %592 = vrot.lane.b32.xlu0 %v569, 127
        %v593 = vpop.permute.xlu0 %592
        %vm602 = vcmask 130048
        %603 = vst.msk [vmem:[%s135] sm:$0xff] %vm602, %v579
        %604 = vst.msk [vmem:[%s135 + $0x8] sm:$0xff] %vm602, %v581
        %605 = vst.msk [vmem:[%s135 + $0x10] sm:$0xff] %vm602, %v583
        %606 = vst.msk [vmem:[%s135 + $0x18] sm:$0xff] %vm602, %v585
        %607 = vst.msk [vmem:[%s135 + $0x20] sm:$0xff] %vm602, %v587
        %608 = vst.msk [vmem:[%s135 + $0x28] sm:$0xff] %vm602, %v589
        %609 = vst.msk [vmem:[%s135 + $0x30] sm:$0xff] %vm602, %v591
        %610 = vst.msk [vmem:[%s135 + $0x38] sm:$0xff] %vm602, %v593
        %s611 = sand.u32 %s52, 1
        %s612 = scalar_lea.sflag [#allocation5], %s611
        %s613 = sand.u32 %s52, 1
        %s614 = smul.addr %s613, 64
        %s615 = scalar_lea.vmem [#allocation6], %s614
        // Predicated region
        $region29: #{tpu_custom_call.1} parent=23 // pred_check
          %p616 = pneg %p62
        $region30: #{tpu_custom_call.1} parent=23 // pred_check_branch
          %618 = sbr.rel (%p616) target = $region32
        $region31: #{tpu_custom_call.1} parent=23 // pred_region
          %s619 = smul.u32 4, %s18
          %s621 = ssub.s32 1024, 1024
          %622 = vsyncadd %s612, %s621
          %s623 = smul.addr %s619, 2
          %s624 = smul.addr %s623, 128
          %s625 = scalar_lea.hbm %s1, %s624
          %s626 = sshll.u32 %s615, 4
          %s627 = int_to_ptr.vmem [resolvable:$true] %s626
          %632 = dma.vmem_to_hbm [thread:$0]  %s627, 1024, %s625, %s612, 128, 128, 8
        $region32: #{tpu_custom_call.1} parent=23 // pred_fallthru
          _
      $region24: #{tpu_custom_call.1} parent=5 // pred_fallthru
        _
      %p633 = scmp.le.s32.totalorder 2, %s13
      // Predicated region
      $region33: #{tpu_custom_call.1} parent=5 // pred_check
        %p634 = pneg %p633
      $region34: #{tpu_custom_call.1} parent=5 // pred_check_branch
        %636 = sbr.rel (%p634) target = $region36
      $region35: #{tpu_custom_call.1} parent=5 // pred_region
        %s637 = ssub.s32 %s13, 2
        // Predicated region
        $region37: #{tpu_custom_call.1} parent=35 // pred_check
          %p638 = pneg %p68
        $region38: #{tpu_custom_call.1} parent=35 // pred_check_branch
          %640 = sbr.rel (%p638) target = $region40
        $region39: #{tpu_custom_call.1} parent=35 // pred_region
          %s641 = sand.u32 %s53, 1
          %s642 = scalar_lea.sflag [#allocation5], %s641
          %s643 = sand.u32 %s53, 1
          %s644 = smul.addr %s643, 64
          %s645 = scalar_lea.vmem [#allocation6], %s644
          %646 = dma.done %s642, 1024
        $region40: #{tpu_custom_call.1} parent=35 // pred_fallthru
          _
      $region36: #{tpu_custom_call.1} parent=5 // pred_fallthru
        _
    $region6: #{tpu_custom_call.1} parent=1 // loop_footer
      %s17 = sadd.s32 1, %s13
    $region7: #{tpu_custom_call.1} parent=1 // loop_footer_branch
      %12 = sbr.rel target = $region3
    $region8: #{tpu_custom_call.1} parent=1 // loop_exit
      _
    %647 = vsyncpa [#allocation4], 1
    %s648 = scalar_lea.sflag [#allocation4], 1
    %649 = vsyncpa %s648, 1
    %650 = vsyncpa [#allocation5], 1
    %s651 = scalar_lea.sflag [#allocation5], 1
    %652 = vsyncpa %s651, 1

</llo_original>
